<compile_context>
chip_gen: v6e
topology: v6e:2x2x1
jax: 0.10.0
libtpu: 0.0.40
codegen_flags: <defaults>
</compile_context>

<pallas_src>
import functools
import numpy as np
import jax
import jax.numpy as jnp
from jax import lax
from jax.experimental import pallas as pl
from jax.experimental.pallas import tpu as pltpu


# ----------------------------- in-kernel helpers ---------------------------- #

def _cconv3x3_packed(img, pad_ref, w, b):
    """3x3 complex conv on a packed [r|i] image via one im2col matmul.

    img: (hs, ws, cp) value, cp = 2*Cin packed [real | imag] channels.
    pad_ref: VMEM scratch (hs+2, ws+2, cp); its border is already zero.
    w: (9*cp, 2*Cout) packed weight; b: (1, 2*Cout) packed bias.
    Returns (hs*ws, 2*Cout) = [out_r | out_i].
    """
    hs, ws, cp = img.shape
    # border stays zero across grid steps; only the interior changes
    pad_ref[1:hs + 1, 1:ws + 1, :] = img
    cols = [pad_ref[dy:dy + hs, dx:dx + ws, :].reshape(hs * ws, cp)
            for dy in range(3) for dx in range(3)]
    m = jnp.concatenate(cols, axis=-1)                       # (hw, 9*cp)
    return jnp.dot(m, w, preferred_element_type=jnp.float32) + b


def _accum_stats(st_ref, y, c):
    """Accumulate [sum_r|sum_i], [sum_rr|sum_ii], [sum_ri|sum_ri] with one RMW."""
    s0 = jnp.sum(y, axis=0, keepdims=True)                   # (1, 2c)
    s1 = jnp.sum(y * y, axis=0, keepdims=True)               # (1, 2c)
    ri = jnp.sum(y[:, :c] * y[:, c:], axis=0, keepdims=True) # (1, c)
    st_ref[...] += jnp.concatenate(
        [s0, s1, jnp.concatenate([ri, ri], axis=-1)], axis=0)


# --------------------------------- kernels ---------------------------------- #

def _pool_cconv_stats_kernel(x_ref, w_ref, b_ref, y_ref, st_ref, pad_ref):
    # x_ref: (h2, 2, w2, 4*Cin)  dim1 = row parity, last dim = [w-even [r|i] | w-odd [r|i]]
    # w_ref: (18*Cin, 2*Cmid); b_ref: (1, 2*Cmid)
    # y_ref: (1, h2*w2, 2*Cmid) packed conv1 output; st_ref: (3, 2*Cmid) moments accumulator
    c4 = x_ref.shape[3]
    cpk = c4 // 2                     # 2*Cin
    cm = y_ref.shape[2] // 2          # Cmid

    @pl.when(pl.program_id(0) == 0)
    def _():
        pad_ref[...] = jnp.zeros_like(pad_ref)
        st_ref[...] = jnp.zeros_like(st_ref)

    xx = x_ref[...]                                   # (h2, 2, w2, 4*Cin)
    s = xx[:, 0, :, :] + xx[:, 1, :, :]               # vertical 2-sum  (h2, w2, 4*Cin)
    pooled = (s[:, :, :cpk] + s[:, :, cpk:]) * 0.25   # horizontal 2-sum (h2, w2, 2*Cin)

    y = _cconv3x3_packed(pooled, pad_ref, w_ref[...], b_ref[...])
    y_ref[0] = y
    _accum_stats(st_ref, y, cm)


def _bnrelu_cconv_stats_kernel(y_ref, coef_ref, w_ref, b_ref, o_ref, st_ref,
                               pad_ref, *, h2, w2):
    # y_ref: (1, hw, 2*Cmid) pre-BN conv1 output; coef_ref: (3, 2*Cmid) folded BN1 affine
    # w_ref: (18*Cmid, 2*Cout); b_ref: (1, 2*Cout)
    # o_ref: (1, hw, 2*Cout); st_ref: (3, 2*Cout)
    cm2 = y_ref.shape[2]
    cm = cm2 // 2
    co = o_ref.shape[2] // 2

    @pl.when(pl.program_id(0) == 0)
    def _():
        pad_ref[...] = jnp.zeros_like(pad_ref)
        st_ref[...] = jnp.zeros_like(st_ref)

    y = y_ref[0]                                                    # (hw, 2*Cmid)
    ysw = jnp.concatenate([y[:, cm:], y[:, :cm]], axis=-1)          # [yi | yr]
    z = y * coef_ref[0:1, :] + ysw * coef_ref[1:2, :] + coef_ref[2:3, :]
    a = jnp.maximum(z, 0.0)                                         # ComplexReLU
    asp = a.reshape(h2, w2, cm2)

    o = _cconv3x3_packed(asp, pad_ref, w_ref[...], b_ref[...])
    o_ref[0] = o
    _accum_stats(st_ref, o, co)


def _bnrelu_kernel(y_ref, coef_ref, o_ref):
    c = y_ref.shape[2] // 2
    y = y_ref[0]
    ysw = jnp.concatenate([y[:, c:], y[:, :c]], axis=-1)
    z = y * coef_ref[0:1, :] + ysw * coef_ref[1:2, :] + coef_ref[2:3, :]
    o_ref[0] = jnp.maximum(z, 0.0)


# ------------------------------ host-side helpers --------------------------- #

def _pack_conv_weight(wr, wi):
    """(3,3,Cin,Cout) HWIO real/imag -> (9*2*Cin, 2*Cout) so M @ W = [out_r | out_i]."""
    kh, kw, cin, cout = wr.shape
    top = jnp.concatenate([wr, wi], axis=-1)      # rows fed by real input
    bot = jnp.concatenate([-wi, wr], axis=-1)     # rows fed by imag input
    w = jnp.concatenate([top, bot], axis=2)       # (3,3,2*Cin,2*Cout)
    return w.reshape(kh * kw * 2 * cin, 2 * cout)


def _pack_conv_bias(br, bi):
    # out_r gets (br - bi), out_i gets (br + bi)  (matches ComplexConv2d with two biases)
    return jnp.concatenate([br - bi, br + bi]).reshape(1, -1)


def _bn_coef(stats, weight, bias, count, eps=1e-5):
    """Fold complex whitening + affine into a per-channel 2x2 map on packed [r|i] lanes."""
    c = stats.shape[1] // 2
    s0, s1, s2 = stats[0], stats[1], stats[2]
    mu_r = s0[:c] / count
    mu_i = s0[c:] / count
    crr = s1[:c] / count - mu_r * mu_r + eps
    cii = s1[c:] / count - mu_i * mu_i + eps
    cri = s2[:c] / count - mu_r * mu_i
    det = jnp.maximum(crr * cii - cri * cri, 1e-20)
    s = jnp.sqrt(det)
    t = jnp.sqrt(crr + cii + 2.0 * s)
    inv = 1.0 / (s * t)
    rrr = (cii + s) * inv
    rii = (crr + s) * inv
    rri = -cri * inv
    w0, w1, w2 = weight[:, 0], weight[:, 1], weight[:, 2]
    b0, b1 = bias[:, 0], bias[:, 1]
    a_rr = w0 * rrr + w2 * rri
    a_ri = w0 * rri + w2 * rii
    a_ir = w2 * rrr + w1 * rri
    a_ii = w2 * rri + w1 * rii
    c_r = b0 - (a_rr * mu_r + a_ri * mu_i)
    c_i = b1 - (a_ir * mu_r + a_ii * mu_i)
    return jnp.stack([jnp.concatenate([a_rr, a_ii]),
                      jnp.concatenate([a_ri, a_ir]),
                      jnp.concatenate([c_r, c_i])], axis=0)   # (3, 2c)


# -------------------------------- forward ----------------------------------- #

def complex_down_double_conv2d(xr_nchw, xi_nchw, params, eps=1e-5):
    """Forward of Complex_Down_DoubleConv2d. Inputs/outputs are NCHW real/imag planes."""
    n, cin, h, w = xr_nchw.shape
    assert h % 2 == 0 and w % 2 == 0, "2x2 avg-pool assumes even H and W"
    h2, w2 = h // 2, w // 2
    hw = h2 * w2
    cmid = params["w1_r"].shape[-1]
    cout = params["w2_r"].shape[-1]
    f32 = jnp.float32

    # pack [real | imag] channels, go NHWC, then (free, contiguous) reshape so the 2x2
    # pool taps are one untiled dim (row parity) plus the two lane half-blocks (col parity)
    x = jnp.concatenate([xr_nchw, xi_nchw], axis=1)            # (N, 2Cin, H, W)
    x = jnp.transpose(x, (0, 2, 3, 1))                         # (N, H, W, 2Cin)
    x = x.reshape(n * h2, 2, w2, 4 * cin)                      # free reshape

    w1 = _pack_conv_weight(params["w1_r"], params["w1_i"])     # (18*Cin, 2*Cmid)
    b1 = _pack_conv_bias(params["b1_r"], params["b1_i"])
    w2p = _pack_conv_weight(params["w2_r"], params["w2_i"])    # (18*Cmid, 2*Cout)
    b2p = _pack_conv_bias(params["b2_r"], params["b2_i"])

    # ---- kernel A: pool + conv1 + moments1 ---------------------------------- #
    y1, st1 = pl.pallas_call(
        _pool_cconv_stats_kernel,
        grid=(n,),
        in_specs=[
            pl.BlockSpec((h2, 2, w2, 4 * cin), lambda b: (b, 0, 0, 0)),
            pl.BlockSpec((18 * cin, 2 * cmid), lambda b: (0, 0)),
            pl.BlockSpec((1, 2 * cmid), lambda b: (0, 0)),
        ],
        out_specs=[
            pl.BlockSpec((1, hw, 2 * cmid), lambda b: (b, 0, 0)),
            pl.BlockSpec((3, 2 * cmid), lambda b: (0, 0)),
        ],
        out_shape=[
            jax.ShapeDtypeStruct((n, hw, 2 * cmid), f32),
            jax.ShapeDtypeStruct((3, 2 * cmid), f32),
        ],
        scratch_shapes=[pltpu.VMEM((h2 + 2, w2 + 2, 2 * cin), f32)],
        compiler_params=pltpu.CompilerParams(dimension_semantics=("arbitrary",)),
    )(x, w1, b1)
    coef1 = _bn_coef(st1, params["bn1_w"], params["bn1_b"], float(n * hw), eps)

    # ---- kernel B: bn1 + relu (prologue) + conv2 + moments2 ------------------ #
    y2, st2 = pl.pallas_call(
        functools.partial(_bnrelu_cconv_stats_kernel, h2=h2, w2=w2),
        grid=(n,),
        in_specs=[
            pl.BlockSpec((1, hw, 2 * cmid), lambda b: (b, 0, 0)),
            pl.BlockSpec((3, 2 * cmid), lambda b: (0, 0)),
            pl.BlockSpec((18 * cmid, 2 * cout), lambda b: (0, 0)),
            pl.BlockSpec((1, 2 * cout), lambda b: (0, 0)),
        ],
        out_specs=[
            pl.BlockSpec((1, hw, 2 * cout), lambda b: (b, 0, 0)),
            pl.BlockSpec((3, 2 * cout), lambda b: (0, 0)),
        ],
        out_shape=[
            jax.ShapeDtypeStruct((n, hw, 2 * cout), f32),
            jax.ShapeDtypeStruct((3, 2 * cout), f32),
        ],
        scratch_shapes=[pltpu.VMEM((h2 + 2, w2 + 2, 2 * cmid), f32)],
        compiler_params=pltpu.CompilerParams(dimension_semantics=("arbitrary",)),
    )(y1, coef1, w2p, b2p)
    coef2 = _bn_coef(st2, params["bn2_w"], params["bn2_b"], float(n * hw), eps)

    # ---- kernel C: bn2 + relu ------------------------------------------------ #
    out_pk = pl.pallas_call(
        _bnrelu_kernel,
        grid=(n,),
        in_specs=[
            pl.BlockSpec((1, hw, 2 * cout), lambda b: (b, 0, 0)),
            pl.BlockSpec((3, 2 * cout), lambda b: (0, 0)),
        ],
        out_specs=pl.BlockSpec((1, hw, 2 * cout), lambda b: (b, 0, 0)),
        out_shape=jax.ShapeDtypeStruct((n, hw, 2 * cout), f32),
        compiler_params=pltpu.CompilerParams(dimension_semantics=("parallel",)),
    )(y2, coef2)

    out = out_pk.reshape(n, h2, w2, 2 * cout)
    out_r = jnp.transpose(out[..., :cout], (0, 3, 1, 2))
    out_i = jnp.transpose(out[..., cout:], (0, 3, 1, 2))
    return out_r, out_i


# ---------------------- deterministic parameter init ------------------------ #

def init_params(key, c_in, c_out):
    mid = c_out  # mid_channels defaults to out_channels
    ks = jax.random.split(key, 12)
    inv_sqrt2 = float(1.0 / np.sqrt(2.0))

    def nrm(k, shape, scale):
        return scale * jax.random.normal(k, shape, dtype=jnp.float32)

    def bn_w(k, c):
        base = jnp.array([inv_sqrt2, inv_sqrt2, 0.0], jnp.float32)[None, :]
        return base + nrm(k, (c, 3), 0.1)

    return dict(
        w1_r=nrm(ks[0], (3, 3, c_in, mid), 0.25),
        w1_i=nrm(ks[1], (3, 3, c_in, mid), 0.25),
        b1_r=nrm(ks[2], (mid,), 0.1),
        b1_i=nrm(ks[3], (mid,), 0.1),
        bn1_w=bn_w(ks[4], mid),
        bn1_b=nrm(ks[5], (mid, 2), 0.1),
        w2_r=nrm(ks[6], (3, 3, mid, c_out), 0.25),
        w2_i=nrm(ks[7], (3, 3, mid, c_out), 0.25),
        b2_r=nrm(ks[8], (c_out,), 0.1),
        b2_i=nrm(ks[9], (c_out,), 0.1),
        bn2_w=bn_w(ks[10], c_out),
        bn2_b=nrm(ks[11], (c_out, 2), 0.1),
    )


# ------------------------- pure-JAX reference check -------------------------- #

def reference_forward(xr, xi, params, eps=1e-5):
    def avg_pool(x):
        return lax.reduce_window(x, 0.0, lax.add, (1, 1, 2, 2),
                                 (1, 1, 2, 2), "VALID") * 0.25

    def conv(x, w_hwio, b):
        y = lax.conv_general_dilated(x, w_hwio, (1, 1), ((1, 1), (1, 1)),
                                     dimension_numbers=("NCHW", "HWIO", "NCHW"))
        return y + b[None, :, None, None]

    def cconv(xr, xi, wr, wi, br, bi):
        return (conv(xr, wr, br) - conv(xi, wi, bi),
                conv(xi, wr, br) + conv(xr, wi, bi))

    def cbn_relu(xr, xi, w, b):
        mu_r = xr.mean(axis=(0, 2, 3))
        mu_i = xi.mean(axis=(0, 2, 3))
        xrc = xr - mu_r[None, :, None, None]
        xic = xi - mu_i[None, :, None, None]
        cnt = xr.shape[0] * xr.shape[2] * xr.shape[3]
        crr = (xrc ** 2).sum(axis=(0, 2, 3)) / cnt + eps
        cii = (xic ** 2).sum(axis=(0, 2, 3)) / cnt + eps
        cri = (xrc * xic).mean(axis=(0, 2, 3))
        s = jnp.sqrt(crr * cii - cri ** 2)
        t = jnp.sqrt(crr + cii + 2 * s)
        inv = 1.0 / (s * t)
        rrr = (cii + s) * inv
        rii = (crr + s) * inv
        rri = -cri * inv

        def bc(v):
            return v[None, :, None, None]

        zr = bc(rrr) * xrc + bc(rri) * xic
        zi = bc(rii) * xic + bc(rri) * xrc
        o_r = bc(w[:, 0]) * zr + bc(w[:, 2]) * zi + bc(b[:, 0])
        o_i = bc(w[:, 2]) * zr + bc(w[:, 1]) * zi + bc(b[:, 1])
        return jnp.maximum(o_r, 0.0), jnp.maximum(o_i, 0.0)

    pr, pi = avg_pool(xr), avg_pool(xi)
    yr, yi = cconv(pr, pi, params["w1_r"], params["w1_i"],
                   params["b1_r"], params["b1_i"])
    ar, ai = cbn_relu(yr, yi, params["bn1_w"], params["bn1_b"])
    yr2, yi2 = cconv(ar, ai, params["w2_r"], params["w2_i"],
                     params["b2_r"], params["b2_i"])
    return cbn_relu(yr2, yi2, params["bn2_w"], params["bn2_b"])


# ----------------------------------- main ------------------------------------ #

if __name__ == "__main__":
    key = jax.random.PRNGKey(0)
    k_xr, k_xi, k_p = jax.random.split(key, 3)
    N, C_IN, H, W = 2, 4, 16, 16
    C_OUT = 8

    xr = jax.random.normal(k_xr, (N, C_IN, H, W), jnp.float32)
    xi = jax.random.normal(k_xi, (N, C_IN, H, W), jnp.float32)
    params = init_params(k_p, C_IN, C_OUT)

    out_r, out_i = complex_down_double_conv2d(xr, xi, params)
    out_r = jax.block_until_ready(out_r)
    out_i = jax.block_until_ready(out_i)

    assert out_r.shape == (N, C_OUT, H // 2, W // 2)
    assert out_i.shape == (N, C_OUT, H // 2, W // 2)

    ref_r, ref_i = reference_forward(xr, xi, params)
    ok = bool(jnp.allclose(out_r, ref_r, atol=2e-3, rtol=2e-3)) and \
         bool(jnp.allclose(out_i, ref_i, atol=2e-3, rtol=2e-3))
    if not ok:
        err = max(float(jnp.max(jnp.abs(out_r - ref_r))),
                  float(jnp.max(jnp.abs(out_i - ref_i))))
        raise SystemExit(f"Mismatch vs reference, max abs err = {err}")
    print("KERNEL_OK")
</pallas_src>

<mosaic_0001>
module attributes {stable_mosaic.version = 11 : i64} {
  func.func @_pool_cconv_stats_kernel(%arg0: i32, %arg1: memref<8x2x8x16xf32, #tpu.memory_space<vmem>>, %arg2: memref<72x16xf32, #tpu.memory_space<vmem>>, %arg3: memref<1x16xf32, #tpu.memory_space<vmem>>, %arg4: memref<1x64x16xf32, #tpu.memory_space<vmem>>, %arg5: memref<3x16xf32, #tpu.memory_space<vmem>>, %arg6: memref<10x10x8xf32, #tpu.memory_space<vmem>>) attributes {dimension_semantics = [#tpu.dimension_semantics<arbitrary>], iteration_bounds = array<i64: 2>, scalar_prefetch = 0 : i64, scratch_operands = 1 : i64, tpu.core_type = #tpu.core_type<tc>, window_params = [{transform_indices = @transform_0, window_bounds = array<i64: 8, 2, 8, 16>}, {pipeline_mode = #tpu.pipeline_mode<synchronous>, transform_indices = @transform_1, window_bounds = array<i64: 72, 16>}, {pipeline_mode = #tpu.pipeline_mode<synchronous>, transform_indices = @transform_2, window_bounds = array<i64: 1, 16>}, {transform_indices = @transform_3, window_bounds = array<i64: 1, 64, 16>}, {pipeline_mode = #tpu.pipeline_mode<synchronous>, transform_indices = @transform_4, window_bounds = array<i64: 3, 16>}]} {
    %c0_i32 = arith.constant 0 : i32
    %0 = arith.cmpi eq, %arg0, %c0_i32 : i32
    %1 = arith.extui %0 : i1 to i32
    %c0_i32_0 = arith.constant 0 : i32
    %2 = arith.cmpi ne, %1, %c0_i32_0 : i32
    scf.if %2 {
      %cst_47 = arith.constant 0.000000e+00 : f32
      %57 = vector.broadcast %cst_47 : f32 to vector<10x10x8xf32>
      %c0_48 = arith.constant 0 : index
      %c0_49 = arith.constant 0 : index
      %c0_50 = arith.constant 0 : index
      %58 = vector.load %arg6[%c0_48, %c0_49, %c0_50] : memref<10x10x8xf32, #tpu.memory_space<vmem>>, vector<10x10x8xf32>
      tpu.vector_store %arg6[%c0_48, %c0_49, %c0_50], %57 {strides = array<i32>} : memref<10x10x8xf32, #tpu.memory_space<vmem>>, vector<10x10x8xf32>,
      %cst_51 = arith.constant 0.000000e+00 : f32
      %59 = vector.broadcast %cst_51 : f32 to vector<3x16xf32>
      %c0_52 = arith.constant 0 : index
      %c0_53 = arith.constant 0 : index
      %60 = vector.load %arg5[%c0_52, %c0_53] : memref<3x16xf32, #tpu.memory_space<vmem>>, vector<3x16xf32>
      tpu.vector_store %arg5[%c0_52, %c0_53], %59 {strides = array<i32>} : memref<3x16xf32, #tpu.memory_space<vmem>>, vector<3x16xf32>,
    } else {
    }
    %c0 = arith.constant 0 : index
    %c0_1 = arith.constant 0 : index
    %c0_2 = arith.constant 0 : index
    %c0_3 = arith.constant 0 : index
    %3 = vector.load %arg1[%c0, %c0_1, %c0_2, %c0_3] : memref<8x2x8x16xf32, #tpu.memory_space<vmem>>, vector<8x2x8x16xf32>
    %4 = vector.extract_strided_slice %3 {offsets = [0, 0, 0, 0], sizes = [8, 1, 8, 16], strides = [1, 1, 1, 1]} : vector<8x2x8x16xf32> to vector<8x1x8x16xf32>
    %5 = vector.shape_cast %4 : vector<8x1x8x16xf32> to vector<8x8x16xf32>
    %6 = vector.extract_strided_slice %3 {offsets = [0, 1, 0, 0], sizes = [8, 1, 8, 16], strides = [1, 1, 1, 1]} : vector<8x2x8x16xf32> to vector<8x1x8x16xf32>
    %7 = vector.shape_cast %6 : vector<8x1x8x16xf32> to vector<8x8x16xf32>
    %8 = arith.addf %5, %7 : vector<8x8x16xf32>
    %9 = vector.extract_strided_slice %8 {offsets = [0, 0, 0], sizes = [8, 8, 8], strides = [1, 1, 1]} : vector<8x8x16xf32> to vector<8x8x8xf32>
    %10 = vector.extract_strided_slice %8 {offsets = [0, 0, 8], sizes = [8, 8, 8], strides = [1, 1, 1]} : vector<8x8x16xf32> to vector<8x8x8xf32>
    %11 = arith.addf %9, %10 : vector<8x8x8xf32>
    %cst = arith.constant 2.500000e-01 : f32
    %12 = vector.broadcast %cst : f32 to vector<8x8x8xf32>
    %13 = arith.mulf %11, %12 : vector<8x8x8xf32>
    %c0_4 = arith.constant 0 : index
    %c0_5 = arith.constant 0 : index
    %14 = vector.load %arg2[%c0_4, %c0_5] : memref<72x16xf32, #tpu.memory_space<vmem>>, vector<72x16xf32>
    %c0_6 = arith.constant 0 : index
    %c0_7 = arith.constant 0 : index
    %15 = vector.load %arg3[%c0_6, %c0_7] : memref<1x16xf32, #tpu.memory_space<vmem>>, vector<1x16xf32>
    %c1 = arith.constant 1 : index
    %c1_8 = arith.constant 1 : index
    %c0_9 = arith.constant 0 : index
    %16 = vector.load %arg6[%c1, %c1_8, %c0_9] : memref<10x10x8xf32, #tpu.memory_space<vmem>>, vector<8x8x8xf32>
    tpu.vector_store %arg6[%c1, %c1_8, %c0_9], %13 {strides = array<i32>} : memref<10x10x8xf32, #tpu.memory_space<vmem>>, vector<8x8x8xf32>,
    %c0_10 = arith.constant 0 : index
    %c0_11 = arith.constant 0 : index
    %c0_12 = arith.constant 0 : index
    %17 = vector.load %arg6[%c0_10, %c0_11, %c0_12] : memref<10x10x8xf32, #tpu.memory_space<vmem>>, vector<8x8x8xf32>
    %18 = vector.shape_cast %17 : vector<8x8x8xf32> to vector<64x8xf32>
    %c0_13 = arith.constant 0 : index
    %c1_14 = arith.constant 1 : index
    %c0_15 = arith.constant 0 : index
    %19 = vector.load %arg6[%c0_13, %c1_14, %c0_15] : memref<10x10x8xf32, #tpu.memory_space<vmem>>, vector<8x8x8xf32>
    %20 = vector.shape_cast %19 : vector<8x8x8xf32> to vector<64x8xf32>
    %c0_16 = arith.constant 0 : index
    %c2 = arith.constant 2 : index
    %c0_17 = arith.constant 0 : index
    %21 = vector.load %arg6[%c0_16, %c2, %c0_17] : memref<10x10x8xf32, #tpu.memory_space<vmem>>, vector<8x8x8xf32>
    %22 = vector.shape_cast %21 : vector<8x8x8xf32> to vector<64x8xf32>
    %c1_18 = arith.constant 1 : index
    %c0_19 = arith.constant 0 : index
    %c0_20 = arith.constant 0 : index
    %23 = vector.load %arg6[%c1_18, %c0_19, %c0_20] : memref<10x10x8xf32, #tpu.memory_space<vmem>>, vector<8x8x8xf32>
    %24 = vector.shape_cast %23 : vector<8x8x8xf32> to vector<64x8xf32>
    %c1_21 = arith.constant 1 : index
    %c1_22 = arith.constant 1 : index
    %c0_23 = arith.constant 0 : index
    %25 = vector.load %arg6[%c1_21, %c1_22, %c0_23] : memref<10x10x8xf32, #tpu.memory_space<vmem>>, vector<8x8x8xf32>
    %26 = vector.shape_cast %25 : vector<8x8x8xf32> to vector<64x8xf32>
    %c1_24 = arith.constant 1 : index
    %c2_25 = arith.constant 2 : index
    %c0_26 = arith.constant 0 : index
    %27 = vector.load %arg6[%c1_24, %c2_25, %c0_26] : memref<10x10x8xf32, #tpu.memory_space<vmem>>, vector<8x8x8xf32>
    %28 = vector.shape_cast %27 : vector<8x8x8xf32> to vector<64x8xf32>
    %c2_27 = arith.constant 2 : index
    %c0_28 = arith.constant 0 : index
    %c0_29 = arith.constant 0 : index
    %29 = vector.load %arg6[%c2_27, %c0_28, %c0_29] : memref<10x10x8xf32, #tpu.memory_space<vmem>>, vector<8x8x8xf32>
    %30 = vector.shape_cast %29 : vector<8x8x8xf32> to vector<64x8xf32>
    %c2_30 = arith.constant 2 : index
    %c1_31 = arith.constant 1 : index
    %c0_32 = arith.constant 0 : index
    %31 = vector.load %arg6[%c2_30, %c1_31, %c0_32] : memref<10x10x8xf32, #tpu.memory_space<vmem>>, vector<8x8x8xf32>
    %32 = vector.shape_cast %31 : vector<8x8x8xf32> to vector<64x8xf32>
    %c2_33 = arith.constant 2 : index
    %c2_34 = arith.constant 2 : index
    %c0_35 = arith.constant 0 : index
    %33 = vector.load %arg6[%c2_33, %c2_34, %c0_35] : memref<10x10x8xf32, #tpu.memory_space<vmem>>, vector<8x8x8xf32>
    %34 = vector.shape_cast %33 : vector<8x8x8xf32> to vector<64x8xf32>
    %35 = tpu.concatenate %18, %20, %22, %24, %26, %28, %30, %32, %34 in 1 : vector<64x8xf32>, vector<64x8xf32>, vector<64x8xf32>, vector<64x8xf32>, vector<64x8xf32>, vector<64x8xf32>, vector<64x8xf32>, vector<64x8xf32>, vector<64x8xf32> -> vector<64x72xf32>
    %cst_36 = arith.constant dense<0.000000e+00> : vector<64x16xf32>
    %36 = tpu.matmul %35, %14, %cst_36 {dimension_numbers = #tpu.dot_dimension_numbers<[1], [0], [0], [1], [0, 0, 1, 1], [], []>} : vector<64x72xf32>, vector<72x16xf32>, vector<64x16xf32> -> vector<64x16xf32>
    %37 = vector.broadcast %15 : vector<1x16xf32> to vector<64x16xf32>
    %38 = arith.addf %36, %37 : vector<64x16xf32>
    %c0_37 = arith.constant 0 : index
    %c0_38 = arith.constant 0 : index
    %c0_39 = arith.constant 0 : index
    %39 = vector.load %arg4[%c0_37, %c0_38, %c0_39] : memref<1x64x16xf32, #tpu.memory_space<vmem>>, vector<1x64x16xf32>
    %40 = vector.shape_cast %39 : vector<1x64x16xf32> to vector<64x16xf32>
    %41 = vector.shape_cast %38 : vector<64x16xf32> to vector<1x64x16xf32>
    tpu.vector_store %arg4[%c0_37, %c0_38, %c0_39], %41 {strides = array<i32>} : memref<1x64x16xf32, #tpu.memory_space<vmem>>, vector<1x64x16xf32>,
    %cst_40 = arith.constant dense<0.000000e+00> : vector<16xf32>
    %42 = vector.multi_reduction <add>, %38, %cst_40 [0] : vector<64x16xf32> to vector<16xf32>
    %43 = vector.shape_cast %42 : vector<16xf32> to vector<1x16xf32>
    %44 = arith.mulf %38, %38 : vector<64x16xf32>
    %cst_41 = arith.constant dense<0.000000e+00> : vector<16xf32>
    %45 = vector.multi_reduction <add>, %44, %cst_41 [0] : vector<64x16xf32> to vector<16xf32>
    %46 = vector.shape_cast %45 : vector<16xf32> to vector<1x16xf32>
    %47 = vector.extract_strided_slice %38 {offsets = [0, 0], sizes = [64, 8], strides = [1, 1]} : vector<64x16xf32> to vector<64x8xf32>
    %48 = vector.extract_strided_slice %38 {offsets = [0, 8], sizes = [64, 8], strides = [1, 1]} : vector<64x16xf32> to vector<64x8xf32>
    %49 = arith.mulf %47, %48 : vector<64x8xf32>
    %cst_42 = arith.constant dense<0.000000e+00> : vector<8xf32>
    %50 = vector.multi_reduction <add>, %49, %cst_42 [0] : vector<64x8xf32> to vector<8xf32>
    %51 = vector.shape_cast %50 : vector<8xf32> to vector<1x8xf32>
    %c0_43 = arith.constant 0 : index
    %c0_44 = arith.constant 0 : index
    %52 = vector.load %arg5[%c0_43, %c0_44] : memref<3x16xf32, #tpu.memory_space<vmem>>, vector<3x16xf32>
    %53 = tpu.concatenate %51, %51 in 1 : vector<1x8xf32>, vector<1x8xf32> -> vector<1x16xf32>
    %54 = tpu.concatenate %43, %46, %53 in 0 : vector<1x16xf32>, vector<1x16xf32>, vector<1x16xf32> -> vector<3x16xf32>
    %55 = arith.addf %52, %54 : vector<3x16xf32>
    %c0_45 = arith.constant 0 : index
    %c0_46 = arith.constant 0 : index
    %56 = vector.load %arg5[%c0_45, %c0_46] : memref<3x16xf32, #tpu.memory_space<vmem>>, vector<3x16xf32>
    tpu.vector_store %arg5[%c0_45, %c0_46], %55 {strides = array<i32>} : memref<3x16xf32, #tpu.memory_space<vmem>>, vector<3x16xf32>,
    return
  }
  func.func @transform_0(%arg0: i32) -> (i32, i32, i32, i32) {
    %c0_i32 = arith.constant 0 : i32
    %c0_i32_0 = arith.constant 0 : i32
    %c0_i32_1 = arith.constant 0 : i32
    %c0_i32_2 = arith.constant 0 : i32
    return %arg0, %c0_i32, %c0_i32_0, %c0_i32_1 : i32, i32, i32, i32
  }
  func.func @transform_1(%arg0: i32) -> (i32, i32) {
    %c0_i32 = arith.constant 0 : i32
    %c0_i32_0 = arith.constant 0 : i32
    %c0_i32_1 = arith.constant 0 : i32
    return %c0_i32, %c0_i32_0 : i32, i32
  }
  func.func @transform_2(%arg0: i32) -> (i32, i32) {
    %c0_i32 = arith.constant 0 : i32
    %c0_i32_0 = arith.constant 0 : i32
    %c0_i32_1 = arith.constant 0 : i32
    return %c0_i32, %c0_i32_0 : i32, i32
  }
  func.func @transform_3(%arg0: i32) -> (i32, i32, i32) {
    %c0_i32 = arith.constant 0 : i32
    %c0_i32_0 = arith.constant 0 : i32
    %c0_i32_1 = arith.constant 0 : i32
    return %arg0, %c0_i32, %c0_i32_0 : i32, i32, i32
  }
  func.func @transform_4(%arg0: i32) -> (i32, i32) {
    %c0_i32 = arith.constant 0 : i32
    %c0_i32_0 = arith.constant 0 : i32
    %c0_i32_1 = arith.constant 0 : i32
    return %c0_i32, %c0_i32_0 : i32, i32
  }
}

</mosaic_0001>

<llo_original>
// kernel: tpu_custom_call.1
$region0: #{tpu_custom_call.1}
  #allocation0 [shape = 'u32[]', space=smem, size = 0x4, offset = 0x4, fixed_abs, tag = 'smem constant byte address 0x4 - core index']
  #allocation1 [shape = 'u32[144,128]{1,0:T(1,128)}', space=vmem, size = 0x12000, scoped, tag = 'internal scratch']
  #allocation2 [shape = 'f32[10,10,8]{2,1,0:T(8,128)}', space=vmem, size = 0x14000, scoped, tag = 'scratch operand']
  %s0 = inlined_call_operand.hbm [shape: f32[16,2,8,16], index: 0, kind: input, shape index: {}]
  %s1 = inlined_call_operand.vmem [shape: f32[72,16], index: 1, kind: input, shape index: {}]
  %s2 = inlined_call_operand.vmem [shape: f32[1,16], index: 2, kind: input, shape index: {}]
  %s3 = inlined_call_operand.vmem [shape: f32[2,64,16], index: 3, kind: output, shape index: {0}]
  %s4 = inlined_call_operand.hbm [shape: f32[3,16], index: 4, kind: output, shape index: {1}]
  %5 = xla_tuple %s3, %s4
  %s6 = sld [smem:[#allocation0]]
  $region61: #{tpu_custom_call.1} parent=0
    _
  %s8 = ssub.s32 1, %s6
  %s9 = scalar_select 0, %s8, %s6
  $region1: #{tpu_custom_call.1} parent=0
    #allocation3 [shape = 'u8[131072]{0}', space=vmem, size = 0x20000, scoped, tag = 'input window, operand 0']
    #allocation4 [shape = 's32[2]{0}', space=sflag, size = 0x8, scoped, tag = 'scoped memory for tpu_custom_call.1']
    #allocation5 [shape = 's32[2]{0}', space=sflag, size = 0x8, scoped, tag = 'scoped memory for tpu_custom_call.1']
    #allocation6 [shape = 'u8[2048]{0}', space=vmem, size = 0x800, scoped, tag = 'output window, operand 1, single buffered']
    %10 = vsyncpa [#allocation4], 0
    %s11 = scalar_lea.sflag [#allocation4], 1
    %12 = vsyncpa %s11, 0
    %13 = vsyncpa [#allocation5], 0
    loop: start=0, step=1, limit=4
    $region2: #{tpu_custom_call.1} parent=1 // loop_pre_header
      _
    $region3: #{tpu_custom_call.1} parent=1 // loop_header
      %s15 = sphi 0, %s19
      %p16 = scmp.ge.s32.totalorder %s15, 4
      %s25 = sphi 0, %s27
      %s28 = sphi 0, %s25
      %s29 = sphi 0, %s28
      %s45 = sphi 0, %s29
      %s49 = sphi 0, %s49
      %s51 = sphi 0, %s49
      %s52 = sphi 0, %s51
      %s66 = sphi 0, %s52
      %s70 = sphi 0, %s70
      %s72 = sphi 0, %s70
      %s73 = sphi 0, %s72
      %s87 = sphi 0, %s73
      %s93 = sphi 0, %s95
      %s96 = sphi 0, %s93
      %s97 = sphi 0, %s96
      %s113 = sphi 0, %s97
      %s117 = sphi 0, %s117
      %s119 = sphi 0, %s117
      %s120 = sphi 0, %s119
      %s134 = sphi 0, %s120
    $region4: #{tpu_custom_call.1} parent=1 // loop_header_branch
      %18 = sbr.rel (%p16) target = $region8
    $region5: #{tpu_custom_call.1} parent=1 // loop_body
      %s20 = ssub.s32 %s15, 1
      %s21 = ssub.s32 %s15, 2
      %s22 = sadd.s32 %s15, 1
      %s23 = ssub.s32 %s15, %s22
      %p24 = scmp.eq.s32.totalorder %s23, 0
      %s26 = sadd.s32 %s25, 1
      %s27 = scalar_select %p24, %s25, %s26
      %p30 = pneg %p24
      %p31 = scmp.eq.s32.totalorder %s15, 1
      %p32 = por %p30, %p31
      %p33 = scmp.ne.s32.totalorder %s25, %s28
      %p34 = scmp.eq.s32.totalorder %s15, 0
      %p35 = por %p33, %p34
      %p36 = scmp.ne.s32.totalorder %s25, %s28
      %p37 = scmp.eq.s32.totalorder %s20, 1
      %p38 = por %p36, %p37
      %p39 = scmp.ne.s32.totalorder %s28, %s29
      %p40 = scmp.eq.s32.totalorder %s20, 0
      %p41 = por %p39, %p40
      %p42 = scmp.ne.s32.totalorder %s28, %s29
      %p43 = scmp.eq.s32.totalorder %s21, 1
      %p44 = por %p42, %p43
      %p46 = scmp.ne.s32.totalorder %s29, %s45
      %p47 = scmp.eq.s32.totalorder %s21, 0
      %p48 = por %p46, %p47
      %s50 = sadd.s32 %s49, 1
      %p53 = scmp.eq.s32.totalorder %s15, 1
      %p54 = scmp.ne.s32.totalorder %s49, %s51
      %p55 = scmp.eq.s32.totalorder %s15, 0
      %p56 = por %p54, %p55
      %p57 = scmp.ne.s32.totalorder %s49, %s51
      %p58 = scmp.eq.s32.totalorder %s20, 1
      %p59 = por %p57, %p58
      %p60 = scmp.ne.s32.totalorder %s51, %s52
      %p61 = scmp.eq.s32.totalorder %s20, 0
      %p62 = por %p60, %p61
      %p63 = scmp.ne.s32.totalorder %s51, %s52
      %p64 = scmp.eq.s32.totalorder %s21, 1
      %p65 = por %p63, %p64
      %p67 = scmp.ne.s32.totalorder %s52, %s66
      %p68 = scmp.eq.s32.totalorder %s21, 0
      %p69 = por %p67, %p68
      %s71 = sadd.s32 %s70, 1
      %p74 = scmp.eq.s32.totalorder %s15, 1
      %p75 = scmp.ne.s32.totalorder %s70, %s72
      %p76 = scmp.eq.s32.totalorder %s15, 0
      %p77 = por %p75, %p76
      %p78 = scmp.ne.s32.totalorder %s70, %s72
      %p79 = scmp.eq.s32.totalorder %s20, 1
      %p80 = por %p78, %p79
      %p81 = scmp.ne.s32.totalorder %s72, %s73
      %p82 = scmp.eq.s32.totalorder %s20, 0
      %p83 = por %p81, %p82
      %p84 = scmp.ne.s32.totalorder %s72, %s73
      %p85 = scmp.eq.s32.totalorder %s21, 1
      %p86 = por %p84, %p85
      %p88 = scmp.ne.s32.totalorder %s73, %s87
      %p89 = scmp.eq.s32.totalorder %s21, 0
      %p90 = por %p88, %p89
      %s91 = ssub.s32 %s15, %s22
      %p92 = scmp.eq.s32.totalorder %s91, 0
      %s94 = sadd.s32 %s93, 1
      %s95 = scalar_select %p92, %s93, %s94
      %p98 = pneg %p92
      %p99 = scmp.eq.s32.totalorder %s15, 1
      %p100 = por %p98, %p99
      %p101 = scmp.ne.s32.totalorder %s93, %s96
      %p102 = scmp.eq.s32.totalorder %s15, 0
      %p103 = por %p101, %p102
      %p104 = scmp.ne.s32.totalorder %s93, %s96
      %p105 = scmp.eq.s32.totalorder %s20, 1
      %p106 = por %p104, %p105
      %p107 = scmp.ne.s32.totalorder %s96, %s97
      %p108 = scmp.eq.s32.totalorder %s20, 0
      %p109 = por %p107, %p108
      %p110 = scmp.ne.s32.totalorder %s96, %s97
      %p111 = scmp.eq.s32.totalorder %s21, 1
      %p112 = por %p110, %p111
      %p114 = scmp.ne.s32.totalorder %s97, %s113
      %p115 = scmp.eq.s32.totalorder %s21, 0
      %p116 = por %p114, %p115
      %s118 = sadd.s32 %s117, 1
      %p121 = scmp.eq.s32.totalorder %s15, 1
      %p122 = scmp.ne.s32.totalorder %s117, %s119
      %p123 = scmp.eq.s32.totalorder %s15, 0
      %p124 = por %p122, %p123
      %p125 = scmp.ne.s32.totalorder %s117, %s119
      %p126 = scmp.eq.s32.totalorder %s20, 1
      %p127 = por %p125, %p126
      %p128 = scmp.ne.s32.totalorder %s119, %s120
      %p129 = scmp.eq.s32.totalorder %s20, 0
      %p130 = por %p128, %p129
      %p131 = scmp.ne.s32.totalorder %s119, %s120
      %p132 = scmp.eq.s32.totalorder %s21, 1
      %p133 = por %p131, %p132
      %p135 = scmp.ne.s32.totalorder %s120, %s134
      %p136 = scmp.eq.s32.totalorder %s21, 0
      %p137 = por %p135, %p136
      %p138 = scmp.le.s32.totalorder 1, %s15
      %p139 = scmp.lt.s32.totalorder %s15, 3
      %p140 = pnand %p138, %p139
      %p141 = pneg %p140
      // Predicated region
      $region9: #{tpu_custom_call.1} parent=5 // pred_check
        _
      $region10: #{tpu_custom_call.1} parent=5 // pred_check_branch
        %143 = sbr.rel (%p140) target = $region12
      $region11: #{tpu_custom_call.1} parent=5 // pred_region
        %s144 = ssub.s32 %s15, 1
        // Predicated region
        $region13: #{tpu_custom_call.1} parent=11 // pred_check
          %p145 = pneg %p62
        $region14: #{tpu_custom_call.1} parent=11 // pred_check_branch
          %147 = sbr.rel (%p145) target = $region16
        $region15: #{tpu_custom_call.1} parent=11 // pred_region
          _
        $region16: #{tpu_custom_call.1} parent=11 // pred_fallthru
          _
        // Predicated region
        $region17: #{tpu_custom_call.1} parent=11 // pred_check
          %p148 = pneg %p83
        $region18: #{tpu_custom_call.1} parent=11 // pred_check_branch
          %150 = sbr.rel (%p148) target = $region20
        $region19: #{tpu_custom_call.1} parent=11 // pred_region
          _
        $region20: #{tpu_custom_call.1} parent=11 // pred_fallthru
          _
      $region12: #{tpu_custom_call.1} parent=5 // pred_fallthru
        _
      %p151 = scmp.lt.s32.totalorder %s15, 2
      // Predicated region
      $region21: #{tpu_custom_call.1} parent=5 // pred_check
        %p152 = pneg %p151
      $region22: #{tpu_custom_call.1} parent=5 // pred_check_branch
        %154 = sbr.rel (%p152) target = $region24
      $region23: #{tpu_custom_call.1} parent=5 // pred_region
        // Predicated region
        $region25: #{tpu_custom_call.1} parent=23 // pred_check
          %p155 = pneg %p35
        $region26: #{tpu_custom_call.1} parent=23 // pred_check_branch
          %157 = sbr.rel (%p155) target = $region28
        $region27: #{tpu_custom_call.1} parent=23 // pred_region
          %s158 = sand.u32 %s25, 1
          %s159 = scalar_lea.sflag [#allocation4], %s158
          %s160 = sand.u32 %s25, 1
          %s161 = smul.addr %s160, 128
          %s162 = scalar_lea.vmem [#allocation3], %s161
          %s163 = smul.u32 8, %s15
          %s165 = ssub.s32 2048, 2048
          %166 = vsyncadd %s159, %s165
          %s167 = smul.addr %s163, 2
          %s168 = smul.addr %s167, 128
          %s169 = scalar_lea.hbm %s0, %s168
          %s170 = sshll.u32 %s162, 4
          %s171 = int_to_ptr.vmem [resolvable:$true] %s170
          %176 = dma.hbm_to_vmem [thread:$0]  %s169, 2048, %s171, %s159, 128, 128, 8
        $region28: #{tpu_custom_call.1} parent=23 // pred_fallthru
          _
      $region24: #{tpu_custom_call.1} parent=5 // pred_fallthru
        _
      %p177 = scmp.le.s32.totalorder 1, %s15
      %p178 = scmp.lt.s32.totalorder %s15, 3
      %p179 = pnand %p177, %p178
      %p180 = pneg %p179
      // Predicated region
      $region29: #{tpu_custom_call.1} parent=5 // pred_check
        _
      $region30: #{tpu_custom_call.1} parent=5 // pred_check_branch
        %182 = sbr.rel (%p179) target = $region32
      $region31: #{tpu_custom_call.1} parent=5 // pred_region
        %s183 = ssub.s32 %s15, 1
        %s184 = sand.u32 %s28, 1
        %s185 = scalar_lea.sflag [#allocation4], %s184
        %s186 = sand.u32 %s28, 1
        %s187 = smul.addr %s186, 128
        %s188 = scalar_lea.vmem [#allocation3], %s187
        // Predicated region
        $region33: #{tpu_custom_call.1} parent=31 // pred_check
          %p189 = pneg %p41
        $region34: #{tpu_custom_call.1} parent=31 // pred_check_branch
          %191 = sbr.rel (%p189) target = $region36
        $region35: #{tpu_custom_call.1} parent=31 // pred_region
          %192 = dma.done %s185, 2048
        $region36: #{tpu_custom_call.1} parent=31 // pred_fallthru
          _
        %s193 = sand.u32 %s28, 1
        %s194 = scalar_lea.sflag [#allocation4], %s193
        %s195 = sand.u32 %s28, 1
        %s196 = smul.addr %s195, 128
        %s197 = scalar_lea.vmem [#allocation3], %s196
        %p198 = pneg %p41
        %p199 = pneg %p38
        %p200 = pneg %p62
        %p201 = pneg %p59
        %p202 = pneg %p83
        %p203 = pneg %p80
        %p204 = pneg %p109
        %p205 = pneg %p106
        %p206 = scmp.lt.s32.totalorder %s20, 1
        %s207 = scalar_select %p206, %s20, 1
        %s208 = smul.addr %s207, 8
        %s209 = smul.addr %s208, 8
        %s210 = scalar_lea.vmem %s3, %s209
        %p211 = pneg %p130
        %p212 = pneg %p127
        %s213 = smul.u32 8, %s20
        %p214 = scmp.lt.s32.totalorder %s20, 1
        %s215 = scalar_select %p214, %s20, 1
        %s216 = smul.addr %s215, 8
        %s217 = smul.addr %s216, 8
        %s218 = scalar_lea.vmem %s3, %s217
        %p219 = scmp.eq.s32.totalorder %s20, 0
        // Predicated region
        $region37: #{tpu_custom_call.1} parent=31 // pred_check
          %p220 = pneg %p219
        $region38: #{tpu_custom_call.1} parent=31 // pred_check_branch
          %222 = sbr.rel (%p220) target = $region40
        $region39: #{tpu_custom_call.1} parent=31 // pred_region
          %vm223 = vcmask 64512
          %224 = vst.msk [vmem:[#allocation2] sm:$0xff] %vm223, 0.0
          %vm225 = vcmask 58368
          %226 = vst.msk [vmem:[#allocation2 + $0x8] sm:$0x3] %vm225, 0.0
          %227 = vst.msk [vmem:[#allocation2 + $0x10] sm:$0xff] %vm223, 0.0
          %228 = vst.msk [vmem:[#allocation2 + $0x18] sm:$0x3] %vm225, 0.0
          %229 = vst.msk [vmem:[#allocation2 + $0x20] sm:$0xff] %vm223, 0.0
          %230 = vst.msk [vmem:[#allocation2 + $0x28] sm:$0x3] %vm225, 0.0
          %231 = vst.msk [vmem:[#allocation2 + $0x30] sm:$0xff] %vm223, 0.0
          %232 = vst.msk [vmem:[#allocation2 + $0x38] sm:$0x3] %vm225, 0.0
          %233 = vst.msk [vmem:[#allocation2 + $0x40] sm:$0xff] %vm223, 0.0
          %234 = vst.msk [vmem:[#allocation2 + $0x48] sm:$0x3] %vm225, 0.0
          %235 = vst.msk [vmem:[#allocation2 + $0x50] sm:$0xff] %vm223, 0.0
          %236 = vst.msk [vmem:[#allocation2 + $0x58] sm:$0x3] %vm225, 0.0
          %237 = vst.msk [vmem:[#allocation2 + $0x60] sm:$0xff] %vm223, 0.0
          %238 = vst.msk [vmem:[#allocation2 + $0x68] sm:$0x3] %vm225, 0.0
          %239 = vst.msk [vmem:[#allocation2 + $0x70] sm:$0xff] %vm223, 0.0
          %240 = vst.msk [vmem:[#allocation2 + $0x78] sm:$0x3] %vm225, 0.0
          %241 = vst.msk [vmem:[#allocation2 + $0x80] sm:$0xff] %vm223, 0.0
          %242 = vst.msk [vmem:[#allocation2 + $0x88] sm:$0x3] %vm225, 0.0
          %243 = vst.msk [vmem:[#allocation2 + $0x90] sm:$0xff] %vm223, 0.0
          %244 = vst.msk [vmem:[#allocation2 + $0x98] sm:$0x3] %vm225, 0.0
          %vm245 = vcmask 124928
          %246 = vst.msk [vmem:[#allocation6] sm:$0x7] %vm245, 0.0
        $region40: #{tpu_custom_call.1} parent=31 // pred_fallthru
          _
        %v247 = vld [vmem:[%s188] sm:$0xff]
        %v248 = vld [vmem:[%s188 + $0x8] sm:$0xff]
        %v249 = vld [vmem:[%s188 + $0x10] sm:$0xff]
        %v250 = vld [vmem:[%s188 + $0x18] sm:$0xff]
        %v251 = vld [vmem:[%s188 + $0x20] sm:$0xff]
        %v252 = vld [vmem:[%s188 + $0x28] sm:$0xff]
        %v253 = vld [vmem:[%s188 + $0x30] sm:$0xff]
        %v254 = vld [vmem:[%s188 + $0x38] sm:$0xff]
        %v255 = vld [vmem:[%s188 + $0x40] sm:$0xff]
        %v256 = vld [vmem:[%s188 + $0x48] sm:$0xff]
        %v257 = vld [vmem:[%s188 + $0x50] sm:$0xff]
        %v258 = vld [vmem:[%s188 + $0x58] sm:$0xff]
        %v259 = vld [vmem:[%s188 + $0x60] sm:$0xff]
        %v260 = vld [vmem:[%s188 + $0x68] sm:$0xff]
        %v261 = vld [vmem:[%s188 + $0x70] sm:$0xff]
        %v262 = vld [vmem:[%s188 + $0x78] sm:$0xff]
        %v263 = vadd.f32 %v247, %v248
        %v264 = vadd.f32 %v249, %v250
        %v265 = vadd.f32 %v251, %v252
        %v266 = vadd.f32 %v253, %v254
        %v267 = vadd.f32 %v255, %v256
        %v268 = vadd.f32 %v257, %v258
        %v269 = vadd.f32 %v259, %v260
        %v270 = vadd.f32 %v261, %v262
        %279 = vrot.lane.b32.xlu0 %v263, 120
        %v280 = vpop.permute.xlu0 %279
        %281 = vrot.lane.b32.xlu0 %v264, 120
        %v282 = vpop.permute.xlu0 %281
        %283 = vrot.lane.b32.xlu0 %v265, 120
        %v284 = vpop.permute.xlu0 %283
        %285 = vrot.lane.b32.xlu0 %v266, 120
        %v286 = vpop.permute.xlu0 %285
        %287 = vrot.lane.b32.xlu0 %v267, 120
        %v288 = vpop.permute.xlu0 %287
        %289 = vrot.lane.b32.xlu0 %v268, 120
        %v290 = vpop.permute.xlu0 %289
        %291 = vrot.lane.b32.xlu0 %v269, 120
        %v292 = vpop.permute.xlu0 %291
        %293 = vrot.lane.b32.xlu0 %v270, 120
        %v294 = vpop.permute.xlu0 %293
        %v303 = vadd.f32 %v263, %v280
        %v304 = vadd.f32 %v264, %v282
        %v305 = vadd.f32 %v265, %v284
        %v306 = vadd.f32 %v266, %v286
        %v307 = vadd.f32 %v267, %v288
        %v308 = vadd.f32 %v268, %v290
        %v309 = vadd.f32 %v269, %v292
        %v310 = vadd.f32 %v270, %v294
        %v311 = vmul.f32 %v303, 0.25
        %v312 = vmul.f32 %v304, 0.25
        %v313 = vmul.f32 %v305, 0.25
        %v314 = vmul.f32 %v306, 0.25
        %v315 = vmul.f32 %v307, 0.25
        %v316 = vmul.f32 %v308, 0.25
        %v317 = vmul.f32 %v309, 0.25
        %v318 = vmul.f32 %v310, 0.25
        %v319 = vld [vmem:[%s1] sm:$0xff]
        %v320 = vld [vmem:[%s1 + $0x8] sm:$0xff]
        %v321 = vld [vmem:[%s1 + $0x10] sm:$0xff]
        %v322 = vld [vmem:[%s1 + $0x18] sm:$0xff]
        %v323 = vld [vmem:[%s1 + $0x20] sm:$0xff]
        %v324 = vld [vmem:[%s1 + $0x28] sm:$0xff]
        %v325 = vld [vmem:[%s1 + $0x30] sm:$0xff]
        %v326 = vld [vmem:[%s1 + $0x38] sm:$0xff]
        %v327 = vld [vmem:[%s1 + $0x40] sm:$0xff]
        %v328 = vld [vmem:[%s2] sm:$0x1]
        %s329 = scalar_lea.vmem [#allocation2], 16
        %vm330 = vcmask 64512
        %331 = vst.msk [vmem:[%s329 + $0x1] sm:$0xff] %vm330, %v311
        %332 = vst.msk [vmem:[%s329 + $0x11] sm:$0xff] %vm330, %v312
        %333 = vst.msk [vmem:[%s329 + $0x21] sm:$0xff] %vm330, %v313
        %334 = vst.msk [vmem:[%s329 + $0x31] sm:$0xff] %vm330, %v314
        %335 = vst.msk [vmem:[%s329 + $0x41] sm:$0xff] %vm330, %v315
        %336 = vst.msk [vmem:[%s329 + $0x51] sm:$0xff] %vm330, %v316
        %337 = vst.msk [vmem:[%s329 + $0x61] sm:$0xff] %vm330, %v317
        %338 = vst.msk [vmem:[%s329 + $0x71] sm:$0xff] %vm330, %v318
        %v339 = vld [vmem:[#allocation2] sm:$0xff]
        %v340 = vld [vmem:[#allocation2 + $0x10] sm:$0xff]
        %v341 = vld [vmem:[#allocation2 + $0x20] sm:$0xff]
        %v342 = vld [vmem:[#allocation2 + $0x30] sm:$0xff]
        %v343 = vld [vmem:[#allocation2 + $0x40] sm:$0xff]
        %v344 = vld [vmem:[#allocation2 + $0x50] sm:$0xff]
        %v345 = vld [vmem:[#allocation2 + $0x60] sm:$0xff]
        %v346 = vld [vmem:[#allocation2 + $0x70] sm:$0xff]
        %v347 = vld [vmem:[#allocation2 + $0x1] sm:$0xff]
        %v348 = vld [vmem:[#allocation2 + $0x11] sm:$0xff]
        %v349 = vld [vmem:[#allocation2 + $0x21] sm:$0xff]
        %v350 = vld [vmem:[#allocation2 + $0x31] sm:$0xff]
        %v351 = vld [vmem:[#allocation2 + $0x41] sm:$0xff]
        %v352 = vld [vmem:[#allocation2 + $0x51] sm:$0xff]
        %v353 = vld [vmem:[#allocation2 + $0x61] sm:$0xff]
        %v354 = vld [vmem:[#allocation2 + $0x71] sm:$0xff]
        %v355 = vld [vmem:[#allocation2 + $0x2] sm:$0xff]
        %v356 = vld [vmem:[#allocation2 + $0x12] sm:$0xff]
        %v357 = vld [vmem:[#allocation2 + $0x22] sm:$0xff]
        %v358 = vld [vmem:[#allocation2 + $0x32] sm:$0xff]
        %v359 = vld [vmem:[#allocation2 + $0x42] sm:$0xff]
        %v360 = vld [vmem:[#allocation2 + $0x52] sm:$0xff]
        %v361 = vld [vmem:[#allocation2 + $0x62] sm:$0xff]
        %v362 = vld [vmem:[#allocation2 + $0x72] sm:$0xff]
        %v363 = vld [vmem:[%s329] sm:$0xff]
        %v364 = vld [vmem:[%s329 + $0x10] sm:$0xff]
        %v365 = vld [vmem:[%s329 + $0x20] sm:$0xff]
        %v366 = vld [vmem:[%s329 + $0x30] sm:$0xff]
        %v367 = vld [vmem:[%s329 + $0x40] sm:$0xff]
        %v368 = vld [vmem:[%s329 + $0x50] sm:$0xff]
        %v369 = vld [vmem:[%s329 + $0x60] sm:$0xff]
        %v370 = vld [vmem:[%s329 + $0x70] sm:$0xff]
        %v371 = vld [vmem:[%s329 + $0x1] sm:$0xff]
        %v372 = vld [vmem:[%s329 + $0x11] sm:$0xff]
        %v373 = vld [vmem:[%s329 + $0x21] sm:$0xff]
        %v374 = vld [vmem:[%s329 + $0x31] sm:$0xff]
        %v375 = vld [vmem:[%s329 + $0x41] sm:$0xff]
        %v376 = vld [vmem:[%s329 + $0x51] sm:$0xff]
        %v377 = vld [vmem:[%s329 + $0x61] sm:$0xff]
        %v378 = vld [vmem:[%s329 + $0x71] sm:$0xff]
        %v379 = vld [vmem:[%s329 + $0x2] sm:$0xff]
        %v380 = vld [vmem:[%s329 + $0x12] sm:$0xff]
        %v381 = vld [vmem:[%s329 + $0x22] sm:$0xff]
        %v382 = vld [vmem:[%s329 + $0x32] sm:$0xff]
        %v383 = vld [vmem:[%s329 + $0x42] sm:$0xff]
        %v384 = vld [vmem:[%s329 + $0x52] sm:$0xff]
        %v385 = vld [vmem:[%s329 + $0x62] sm:$0xff]
        %v386 = vld [vmem:[%s329 + $0x72] sm:$0xff]
        %s387 = scalar_lea.vmem [#allocation2], 32
        %v388 = vld [vmem:[%s387] sm:$0xff]
        %v389 = vld [vmem:[%s387 + $0x10] sm:$0xff]
        %v390 = vld [vmem:[%s387 + $0x20] sm:$0xff]
        %v391 = vld [vmem:[%s387 + $0x30] sm:$0xff]
        %v392 = vld [vmem:[%s387 + $0x40] sm:$0xff]
        %v393 = vld [vmem:[%s387 + $0x50] sm:$0xff]
        %v394 = vld [vmem:[%s387 + $0x60] sm:$0xff]
        %v395 = vld [vmem:[%s387 + $0x70] sm:$0xff]
        %v396 = vld [vmem:[%s387 + $0x1] sm:$0xff]
        %v397 = vld [vmem:[%s387 + $0x11] sm:$0xff]
        %v398 = vld [vmem:[%s387 + $0x21] sm:$0xff]
        %v399 = vld [vmem:[%s387 + $0x31] sm:$0xff]
        %v400 = vld [vmem:[%s387 + $0x41] sm:$0xff]
        %v401 = vld [vmem:[%s387 + $0x51] sm:$0xff]
        %v402 = vld [vmem:[%s387 + $0x61] sm:$0xff]
        %v403 = vld [vmem:[%s387 + $0x71] sm:$0xff]
        %v404 = vld [vmem:[%s387 + $0x2] sm:$0xff]
        %v405 = vld [vmem:[%s387 + $0x12] sm:$0xff]
        %v406 = vld [vmem:[%s387 + $0x22] sm:$0xff]
        %v407 = vld [vmem:[%s387 + $0x32] sm:$0xff]
        %v408 = vld [vmem:[%s387 + $0x42] sm:$0xff]
        %v409 = vld [vmem:[%s387 + $0x52] sm:$0xff]
        %v410 = vld [vmem:[%s387 + $0x62] sm:$0xff]
        %v411 = vld [vmem:[%s387 + $0x72] sm:$0xff]
        %420 = vrot.lane.b32.xlu0 %v347, 8
        %v421 = vpop.permute.xlu0 %420
        %422 = vrot.lane.b32.xlu0 %v348, 8
        %v423 = vpop.permute.xlu0 %422
        %424 = vrot.lane.b32.xlu0 %v349, 8
        %v425 = vpop.permute.xlu0 %424
        %426 = vrot.lane.b32.xlu0 %v350, 8
        %v427 = vpop.permute.xlu0 %426
        %428 = vrot.lane.b32.xlu0 %v351, 8
        %v429 = vpop.permute.xlu0 %428
        %430 = vrot.lane.b32.xlu0 %v352, 8
        %v431 = vpop.permute.xlu0 %430
        %432 = vrot.lane.b32.xlu0 %v353, 8
        %v433 = vpop.permute.xlu0 %432
        %434 = vrot.lane.b32.xlu0 %v354, 8
        %v435 = vpop.permute.xlu0 %434
        %452 = vrot.lane.b32.xlu0 %v355, 16
        %v453 = vpop.permute.xlu0 %452
        %454 = vrot.lane.b32.xlu0 %v356, 16
        %v455 = vpop.permute.xlu0 %454
        %456 = vrot.lane.b32.xlu0 %v357, 16
        %v457 = vpop.permute.xlu0 %456
        %458 = vrot.lane.b32.xlu0 %v358, 16
        %v459 = vpop.permute.xlu0 %458
        %460 = vrot.lane.b32.xlu0 %v359, 16
        %v461 = vpop.permute.xlu0 %460
        %462 = vrot.lane.b32.xlu0 %v360, 16
        %v463 = vpop.permute.xlu0 %462
        %464 = vrot.lane.b32.xlu0 %v361, 16
        %v465 = vpop.permute.xlu0 %464
        %466 = vrot.lane.b32.xlu0 %v362, 16
        %v467 = vpop.permute.xlu0 %466
        %484 = vrot.lane.b32.xlu0 %v363, 24
        %v485 = vpop.permute.xlu0 %484
        %486 = vrot.lane.b32.xlu0 %v364, 24
        %v487 = vpop.permute.xlu0 %486
        %488 = vrot.lane.b32.xlu0 %v365, 24
        %v489 = vpop.permute.xlu0 %488
        %490 = vrot.lane.b32.xlu0 %v366, 24
        %v491 = vpop.permute.xlu0 %490
        %492 = vrot.lane.b32.xlu0 %v367, 24
        %v493 = vpop.permute.xlu0 %492
        %494 = vrot.lane.b32.xlu0 %v368, 24
        %v495 = vpop.permute.xlu0 %494
        %496 = vrot.lane.b32.xlu0 %v369, 24
        %v497 = vpop.permute.xlu0 %496
        %498 = vrot.lane.b32.xlu0 %v370, 24
        %v499 = vpop.permute.xlu0 %498
        %516 = vrot.lane.b32.xlu0 %v371, 32
        %v517 = vpop.permute.xlu0 %516
        %518 = vrot.lane.b32.xlu0 %v372, 32
        %v519 = vpop.permute.xlu0 %518
        %520 = vrot.lane.b32.xlu0 %v373, 32
        %v521 = vpop.permute.xlu0 %520
        %522 = vrot.lane.b32.xlu0 %v374, 32
        %v523 = vpop.permute.xlu0 %522
        %524 = vrot.lane.b32.xlu0 %v375, 32
        %v525 = vpop.permute.xlu0 %524
        %526 = vrot.lane.b32.xlu0 %v376, 32
        %v527 = vpop.permute.xlu0 %526
        %528 = vrot.lane.b32.xlu0 %v377, 32
        %v529 = vpop.permute.xlu0 %528
        %530 = vrot.lane.b32.xlu0 %v378, 32
        %v531 = vpop.permute.xlu0 %530
        %548 = vrot.lane.b32.xlu0 %v379, 40
        %v549 = vpop.permute.xlu0 %548
        %550 = vrot.lane.b32.xlu0 %v380, 40
        %v551 = vpop.permute.xlu0 %550
        %552 = vrot.lane.b32.xlu0 %v381, 40
        %v553 = vpop.permute.xlu0 %552
        %554 = vrot.lane.b32.xlu0 %v382, 40
        %v555 = vpop.permute.xlu0 %554
        %556 = vrot.lane.b32.xlu0 %v383, 40
        %v557 = vpop.permute.xlu0 %556
        %558 = vrot.lane.b32.xlu0 %v384, 40
        %v559 = vpop.permute.xlu0 %558
        %560 = vrot.lane.b32.xlu0 %v385, 40
        %v561 = vpop.permute.xlu0 %560
        %562 = vrot.lane.b32.xlu0 %v386, 40
        %v563 = vpop.permute.xlu0 %562
        %580 = vrot.lane.b32.xlu0 %v388, 48
        %v581 = vpop.permute.xlu0 %580
        %582 = vrot.lane.b32.xlu0 %v389, 48
        %v583 = vpop.permute.xlu0 %582
        %584 = vrot.lane.b32.xlu0 %v390, 48
        %v585 = vpop.permute.xlu0 %584
        %586 = vrot.lane.b32.xlu0 %v391, 48
        %v587 = vpop.permute.xlu0 %586
        %588 = vrot.lane.b32.xlu0 %v392, 48
        %v589 = vpop.permute.xlu0 %588
        %590 = vrot.lane.b32.xlu0 %v393, 48
        %v591 = vpop.permute.xlu0 %590
        %592 = vrot.lane.b32.xlu0 %v394, 48
        %v593 = vpop.permute.xlu0 %592
        %594 = vrot.lane.b32.xlu0 %v395, 48
        %v595 = vpop.permute.xlu0 %594
        %612 = vrot.lane.b32.xlu0 %v396, 56
        %v613 = vpop.permute.xlu0 %612
        %614 = vrot.lane.b32.xlu0 %v397, 56
        %v615 = vpop.permute.xlu0 %614
        %616 = vrot.lane.b32.xlu0 %v398, 56
        %v617 = vpop.permute.xlu0 %616
        %618 = vrot.lane.b32.xlu0 %v399, 56
        %v619 = vpop.permute.xlu0 %618
        %620 = vrot.lane.b32.xlu0 %v400, 56
        %v621 = vpop.permute.xlu0 %620
        %622 = vrot.lane.b32.xlu0 %v401, 56
        %v623 = vpop.permute.xlu0 %622
        %624 = vrot.lane.b32.xlu0 %v402, 56
        %v625 = vpop.permute.xlu0 %624
        %626 = vrot.lane.b32.xlu0 %v403, 56
        %v627 = vpop.permute.xlu0 %626
        %644 = vrot.lane.b32.xlu0 %v404, 64
        %v645 = vpop.permute.xlu0 %644
        %646 = vrot.lane.b32.xlu0 %v405, 64
        %v647 = vpop.permute.xlu0 %646
        %648 = vrot.lane.b32.xlu0 %v406, 64
        %v649 = vpop.permute.xlu0 %648
        %650 = vrot.lane.b32.xlu0 %v407, 64
        %v651 = vpop.permute.xlu0 %650
        %652 = vrot.lane.b32.xlu0 %v408, 64
        %v653 = vpop.permute.xlu0 %652
        %654 = vrot.lane.b32.xlu0 %v409, 64
        %v655 = vpop.permute.xlu0 %654
        %656 = vrot.lane.b32.xlu0 %v410, 64
        %v657 = vpop.permute.xlu0 %656
        %658 = vrot.lane.b32.xlu0 %v411, 64
        %v659 = vpop.permute.xlu0 %658
        %v668 = vsel %vm330, %v339, %v421
        %v669 = vsel %vm330, %v340, %v423
        %v670 = vsel %vm330, %v341, %v425
        %v671 = vsel %vm330, %v342, %v427
        %v672 = vsel %vm330, %v343, %v429
        %v673 = vsel %vm330, %v344, %v431
        %v674 = vsel %vm330, %v345, %v433
        %v675 = vsel %vm330, %v346, %v435
        %vm676 = vcmask 130048
        %v677 = vsel %vm676, %v668, %v453
        %v678 = vsel %vm676, %v669, %v455
        %v679 = vsel %vm676, %v670, %v457
        %v680 = vsel %vm676, %v671, %v459
        %v681 = vsel %vm676, %v672, %v461
        %v682 = vsel %vm676, %v673, %v463
        %v683 = vsel %vm676, %v674, %v465
        %v684 = vsel %vm676, %v675, %v467
        %vm685 = vcmask 195584
        %v686 = vsel %vm685, %v677, %v485
        %v687 = vsel %vm685, %v678, %v487
        %v688 = vsel %vm685, %v679, %v489
        %v689 = vsel %vm685, %v680, %v491
        %v690 = vsel %vm685, %v681, %v493
        %v691 = vsel %vm685, %v682, %v495
        %v692 = vsel %vm685, %v683, %v497
        %v693 = vsel %vm685, %v684, %v499
        %vm694 = vcmask 261120
        %v695 = vsel %vm694, %v686, %v517
        %v696 = vsel %vm694, %v687, %v519
        %v697 = vsel %vm694, %v688, %v521
        %v698 = vsel %vm694, %v689, %v523
        %v699 = vsel %vm694, %v690, %v525
        %v700 = vsel %vm694, %v691, %v527
        %v701 = vsel %vm694, %v692, %v529
        %v702 = vsel %vm694, %v693, %v531
        %vm703 = vcmask 326656
        %v704 = vsel %vm703, %v695, %v549
        %v705 = vsel %vm703, %v696, %v551
        %v706 = vsel %vm703, %v697, %v553
        %v707 = vsel %vm703, %v698, %v555
        %v708 = vsel %vm703, %v699, %v557
        %v709 = vsel %vm703, %v700, %v559
        %v710 = vsel %vm703, %v701, %v561
        %v711 = vsel %vm703, %v702, %v563
        %vm712 = vcmask 392192
        %v713 = vsel %vm712, %v704, %v581
        %v714 = vsel %vm712, %v705, %v583
        %v715 = vsel %vm712, %v706, %v585
        %v716 = vsel %vm712, %v707, %v587
        %v717 = vsel %vm712, %v708, %v589
        %v718 = vsel %vm712, %v709, %v591
        %v719 = vsel %vm712, %v710, %v593
        %v720 = vsel %vm712, %v711, %v595
        %vm721 = vcmask 457728
        %v722 = vsel %vm721, %v713, %v613
        %v723 = vsel %vm721, %v714, %v615
        %v724 = vsel %vm721, %v715, %v617
        %v725 = vsel %vm721, %v716, %v619
        %v726 = vsel %vm721, %v717, %v621
        %v727 = vsel %vm721, %v718, %v623
        %v728 = vsel %vm721, %v719, %v625
        %v729 = vsel %vm721, %v720, %v627
        %vm730 = vcmask 523264
        %v731 = vsel %vm730, %v722, %v645
        %v732 = vsel %vm730, %v723, %v647
        %v733 = vsel %vm730, %v724, %v649
        %v734 = vsel %vm730, %v725, %v651
        %v735 = vsel %vm730, %v726, %v653
        %v736 = vsel %vm730, %v727, %v655
        %v737 = vsel %vm730, %v728, %v657
        %v738 = vsel %vm730, %v729, %v659
        %v740 = vlaneseq
        %v741 = vshrl.u32 %v740, 7
        %v742 = vsub.s32 0, %v741
        %v743 = vrot.slane %v328, %v742
        %vm745 = vcmask 588800
        %v747 = vsel %vm745, %v731, 0
        %v750 = vsel %vm745, %v732, 0
        %v753 = vsel %vm745, %v733, 0
        %v756 = vsel %vm745, %v734, 0
        %v759 = vsel %vm745, %v735, 0
        %v762 = vsel %vm745, %v736, 0
        %v765 = vsel %vm745, %v737, 0
        %v768 = vsel %vm745, %v738, 0
        %770 = vmatprep.subr.mxu0 0.0
        %771 = vmatpush1.msra.mxu0 0.0
        %772 = vmatprep.subr.mxu0 0.0
        %773 = vmatpush1.msra.mxu0 0.0
        %774 = vmatprep.subr.mxu0 0.0
        %775 = vmatpush1.msra.mxu0 0.0
        %776 = vmatprep.subr.mxu0 0.0
        %777 = vmatpush1.msra.mxu0 0.0
        %778 = vmatprep.subr.mxu0 0.0
        %779 = vmatpush1.msra.mxu0 0.0
        %780 = vmatprep.subr.mxu0 0.0
        %781 = vmatpush1.msra.mxu0 0.0
        %782 = vmatprep.subr.mxu0 0.0
        %783 = vmatpush1.msra.mxu0 0.0
        %784 = vmatprep.subr.mxu0 0.0
        %785 = vmatpush1.msra.mxu0 %v327
        %786 = vmatprep.subr.mxu0 0.0
        %787 = vmatpush1.msra.mxu0 %v326
        %788 = vmatprep.subr.mxu0 0.0
        %789 = vmatpush1.msra.mxu0 %v325
        %790 = vmatprep.subr.mxu0 0.0
        %791 = vmatpush1.msra.mxu0 %v324
        %792 = vmatprep.subr.mxu0 0.0
        %793 = vmatpush1.msra.mxu0 %v323
        %794 = vmatprep.subr.mxu0 0.0
        %795 = vmatpush1.msra.mxu0 %v322
        %796 = vmatprep.subr.mxu0 0.0
        %797 = vmatpush1.msra.mxu0 %v321
        %798 = vmatprep.subr.mxu0 0.0
        %799 = vmatpush1.msra.mxu0 %v320
        %800 = vmatprep.subr.mxu0 0.0
        %801 = vmatpush1.msra.mxu0 %v319
        %802 = vmatprep.subr.mxu0 0.0
        %803 = vmatpush2.msra.mxu0 0.0
        %804 = vmatprep.subr.mxu0 0.0
        %805 = vmatpush2.msra.mxu0 0.0
        %806 = vmatprep.subr.mxu0 0.0
        %807 = vmatpush2.msra.mxu0 0.0
        %808 = vmatprep.subr.mxu0 0.0
        %809 = vmatpush2.msra.mxu0 0.0
        %810 = vmatprep.subr.mxu0 0.0
        %811 = vmatpush2.msra.mxu0 0.0
        %812 = vmatprep.subr.mxu0 0.0
        %813 = vmatpush2.msra.mxu0 0.0
        %814 = vmatprep.subr.mxu0 0.0
        %815 = vmatpush2.msra.mxu0 0.0
        %816 = vmatprep.subr.mxu0 0.0
        %817 = vmatpush2.msra.mxu0 0.0
        %818 = vmatprep.subr.mxu0 0.0
        %819 = vmatpush2.msra.mxu0 0.0
        %820 = vmatprep.subr.mxu0 0.0
        %821 = vmatpush2.msra.mxu0 0.0
        %822 = vmatprep.subr.mxu0 0.0
        %823 = vmatpush2.msra.mxu0 0.0
        %824 = vmatprep.subr.mxu0 0.0
        %825 = vmatpush2.msra.mxu0 0.0
        %826 = vmatprep.subr.mxu0 0.0
        %827 = vmatpush2.msra.mxu0 0.0
        %828 = vmatprep.subr.mxu0 0.0
        %829 = vmatpush2.msra.mxu0 0.0
        %830 = vmatprep.subr.mxu0 0.0
        %831 = vmatpush2.msra.mxu0 0.0
        %832 = vmatprep.subr.mxu0 0.0
        %833 = vmatpush2.msra.mxu0 0.0
        %834 = vmatprep.mubr.f32.mxu0 0.0
        %835 = vmatmul.mubr.f32.gmra.mxu0 %v747
        %v836 = vpop.f32.mrf.mxu0
        %v837 = vadd.f32 %v743, %v836
        %v838 = vpop.f32.mrf.mxu0
        %839 = vmatprep.mubr.f32.mxu0 0.0
        %840 = vmatmul.mubr.f32.gmra.mxu0 %v750
        %v841 = vpop.f32.mrf.mxu0
        %v842 = vadd.f32 %v743, %v841
        %v843 = vpop.f32.mrf.mxu0
        %844 = vmatprep.mubr.f32.mxu0 0.0
        %845 = vmatmul.mubr.f32.gmra.mxu0 %v753
        %v846 = vpop.f32.mrf.mxu0
        %v847 = vadd.f32 %v743, %v846
        %v848 = vpop.f32.mrf.mxu0
        %849 = vmatprep.mubr.f32.mxu0 0.0
        %850 = vmatmul.mubr.f32.gmra.mxu0 %v756
        %v851 = vpop.f32.mrf.mxu0
        %v852 = vadd.f32 %v743, %v851
        %v853 = vpop.f32.mrf.mxu0
        %854 = vmatprep.mubr.f32.mxu0 0.0
        %855 = vmatmul.mubr.f32.gmra.mxu0 %v759
        %v856 = vpop.f32.mrf.mxu0
        %v857 = vadd.f32 %v743, %v856
        %v858 = vpop.f32.mrf.mxu0
        %859 = vmatprep.mubr.f32.mxu0 0.0
        %860 = vmatmul.mubr.f32.gmra.mxu0 %v762
        %v861 = vpop.f32.mrf.mxu0
        %v862 = vadd.f32 %v743, %v861
        %v863 = vpop.f32.mrf.mxu0
        %864 = vmatprep.mubr.f32.mxu0 0.0
        %865 = vmatmul.mubr.f32.gmra.mxu0 %v765
        %v866 = vpop.f32.mrf.mxu0
        %v867 = vadd.f32 %v743, %v866
        %v868 = vpop.f32.mrf.mxu0
        %869 = vmatprep.mubr.f32.mxu0 0.0
        %870 = vmatmul.mubr.f32.gmra.mxu0 %v768
        %v871 = vpop.f32.mrf.mxu0
        %v872 = vadd.f32 %v743, %v871
        %v873 = vpop.f32.mrf.mxu0
        %874 = vdwg.mxu0
        %875 = vst.msk [vmem:[%s218] sm:$0xff] %vm676, %v837
        %876 = vst.msk [vmem:[%s218 + $0x8] sm:$0xff] %vm676, %v842
        %877 = vst.msk [vmem:[%s218 + $0x10] sm:$0xff] %vm676, %v847
        %878 = vst.msk [vmem:[%s218 + $0x18] sm:$0xff] %vm676, %v852
        %879 = vst.msk [vmem:[%s218 + $0x20] sm:$0xff] %vm676, %v857
        %880 = vst.msk [vmem:[%s218 + $0x28] sm:$0xff] %vm676, %v862
        %881 = vst.msk [vmem:[%s218 + $0x30] sm:$0xff] %vm676, %v867
        %882 = vst.msk [vmem:[%s218 + $0x38] sm:$0xff] %vm676, %v872
        %v883 = vsel %vm676, %v837, 0.0
        %v884 = vsel %vm676, %v842, 0.0
        %v885 = vadd.f32 %v883, %v884
        %v886 = vsel %vm676, %v847, 0.0
        %v887 = vadd.f32 %v885, %v886
        %v888 = vsel %vm676, %v852, 0.0
        %v889 = vadd.f32 %v887, %v888
        %v890 = vsel %vm676, %v857, 0.0
        %v891 = vadd.f32 %v889, %v890
        %v892 = vsel %vm676, %v862, 0.0
        %v893 = vadd.f32 %v891, %v892
        %v894 = vsel %vm676, %v867, 0.0
        %v895 = vadd.f32 %v893, %v894
        %v896 = vsel %vm676, %v872, 0.0
        %v897 = vadd.f32 %v895, %v896
        %v898 = vrot.slane %v897, 4
        %v899 = vadd.f32 %v897, %v898
        %v900 = vrot.slane %v899, 2
        %v901 = vadd.f32 %v899, %v900
        %v902 = vrot.slane %v901, 1
        %v903 = vadd.f32 %v901, %v902
        %v904 = vmul.f32 %v837, %v837
        %v905 = vmul.f32 %v842, %v842
        %v906 = vmul.f32 %v847, %v847
        %v907 = vmul.f32 %v852, %v852
        %v908 = vmul.f32 %v857, %v857
        %v909 = vmul.f32 %v862, %v862
        %v910 = vmul.f32 %v867, %v867
        %v911 = vmul.f32 %v872, %v872
        %v912 = vsel %vm676, %v904, 0.0
        %v913 = vsel %vm676, %v905, 0.0
        %v914 = vadd.f32 %v912, %v913
        %v915 = vsel %vm676, %v906, 0.0
        %v916 = vadd.f32 %v914, %v915
        %v917 = vsel %vm676, %v907, 0.0
        %v918 = vadd.f32 %v916, %v917
        %v919 = vsel %vm676, %v908, 0.0
        %v920 = vadd.f32 %v918, %v919
        %v921 = vsel %vm676, %v909, 0.0
        %v922 = vadd.f32 %v920, %v921
        %v923 = vsel %vm676, %v910, 0.0
        %v924 = vadd.f32 %v922, %v923
        %v925 = vsel %vm676, %v911, 0.0
        %v926 = vadd.f32 %v924, %v925
        %v927 = vrot.slane %v926, 4
        %v928 = vadd.f32 %v926, %v927
        %v929 = vrot.slane %v928, 2
        %v930 = vadd.f32 %v928, %v929
        %v931 = vrot.slane %v930, 1
        %v932 = vadd.f32 %v930, %v931
        %941 = vrot.lane.b32.xlu0 %v837, 120
        %v942 = vpop.permute.xlu0 %941
        %943 = vrot.lane.b32.xlu0 %v842, 120
        %v944 = vpop.permute.xlu0 %943
        %945 = vrot.lane.b32.xlu0 %v847, 120
        %v946 = vpop.permute.xlu0 %945
        %947 = vrot.lane.b32.xlu0 %v852, 120
        %v948 = vpop.permute.xlu0 %947
        %949 = vrot.lane.b32.xlu0 %v857, 120
        %v950 = vpop.permute.xlu0 %949
        %951 = vrot.lane.b32.xlu0 %v862, 120
        %v952 = vpop.permute.xlu0 %951
        %953 = vrot.lane.b32.xlu0 %v867, 120
        %v954 = vpop.permute.xlu0 %953
        %955 = vrot.lane.b32.xlu0 %v872, 120
        %v956 = vpop.permute.xlu0 %955
        %v965 = vmul.f32 %v837, %v942
        %v966 = vmul.f32 %v842, %v944
        %v967 = vmul.f32 %v847, %v946
        %v968 = vmul.f32 %v852, %v948
        %v969 = vmul.f32 %v857, %v950
        %v970 = vmul.f32 %v862, %v952
        %v971 = vmul.f32 %v867, %v954
        %v972 = vmul.f32 %v872, %v956
        %v973 = vsel %vm330, %v965, 0.0
        %v974 = vsel %vm330, %v966, 0.0
        %v975 = vadd.f32 %v973, %v974
        %v976 = vsel %vm330, %v967, 0.0
        %v977 = vadd.f32 %v975, %v976
        %v978 = vsel %vm330, %v968, 0.0
        %v979 = vadd.f32 %v977, %v978
        %v980 = vsel %vm330, %v969, 0.0
        %v981 = vadd.f32 %v979, %v980
        %v982 = vsel %vm330, %v970, 0.0
        %v983 = vadd.f32 %v981, %v982
        %v984 = vsel %vm330, %v971, 0.0
        %v985 = vadd.f32 %v983, %v984
        %v986 = vsel %vm330, %v972, 0.0
        %v987 = vadd.f32 %v985, %v986
        %v988 = vrot.slane %v987, 4
        %v989 = vadd.f32 %v987, %v988
        %v990 = vrot.slane %v989, 2
        %v991 = vadd.f32 %v989, %v990
        %v992 = vrot.slane %v991, 1
        %v993 = vadd.f32 %v991, %v992
        %v994 = vld [vmem:[#allocation6] sm:$0x7]
        %996 = vrot.lane.b32.xlu0 %v993, 8
        %v997 = vpop.permute.xlu0 %996
        %v999 = vsel %vm330, %v993, %v997
        %v1001 = vrot.slane %v999, 6
        %vm1003 = vcmask 1040384
        %v1004 = vsel %vm1003, %v903, %v932
        %vm1005 = vcmask 1041408
        %v1006 = vsel %vm1005, %v1004, %v1001
        %v1007 = vadd.f32 %v994, %v1006
        %vm1008 = vcmask 124928
        %1009 = vst.msk [vmem:[#allocation6] sm:$0x7] %vm1008, %v1007
        %p1010 = scmp.lt.s32.totalorder %s20, 1
        %s1011 = scalar_select %p1010, %s20, 1
        %s1012 = smul.addr %s1011, 8
        %s1013 = smul.addr %s1012, 8
        %s1014 = scalar_lea.vmem %s3, %s1013
        // Predicated region
        $region41: #{tpu_custom_call.1} parent=31 // pred_check
          %p1015 = pneg %p106
        $region42: #{tpu_custom_call.1} parent=31 // pred_check_branch
          %1017 = sbr.rel (%p1015) target = $region44
        $region43: #{tpu_custom_call.1} parent=31 // pred_region
          _
        $region44: #{tpu_custom_call.1} parent=31 // pred_fallthru
          _
        // Predicated region
        $region45: #{tpu_custom_call.1} parent=31 // pred_check
          %p1018 = pneg %p127
        $region46: #{tpu_custom_call.1} parent=31 // pred_check_branch
          %1020 = sbr.rel (%p1018) target = $region48
        $region47: #{tpu_custom_call.1} parent=31 // pred_region
          %s1022 = ssub.s32 64, 64
          %1023 = vsyncadd [#allocation5], %s1022
          %s1025 = sshll.u32 [#allocation6], 4
          %s1026 = int_to_ptr.vmem [resolvable:$true] %s1025
          %1028 = dma.vmem_to_hbm [thread:$0]  %s1026, 64, %s4, [#allocation5]
        $region48: #{tpu_custom_call.1} parent=31 // pred_fallthru
          _
        // Predicated region
        $region49: #{tpu_custom_call.1} parent=31 // pred_check
          %p1029 = pneg %p127
        $region50: #{tpu_custom_call.1} parent=31 // pred_check_branch
          %1031 = sbr.rel (%p1029) target = $region52
        $region51: #{tpu_custom_call.1} parent=31 // pred_region
          %1032 = dma.done [#allocation5], 64
        $region52: #{tpu_custom_call.1} parent=31 // pred_fallthru
          _
      $region32: #{tpu_custom_call.1} parent=5 // pred_fallthru
        _
      %p1033 = scmp.le.s32.totalorder 2, %s15
      // Predicated region
      $region53: #{tpu_custom_call.1} parent=5 // pred_check
        %p1034 = pneg %p1033
      $region54: #{tpu_custom_call.1} parent=5 // pred_check_branch
        %1036 = sbr.rel (%p1034) target = $region56
      $region55: #{tpu_custom_call.1} parent=5 // pred_region
        %s1037 = ssub.s32 %s15, 2
        // Predicated region
        $region57: #{tpu_custom_call.1} parent=55 // pred_check
          %p1038 = pneg %p112
        $region58: #{tpu_custom_call.1} parent=55 // pred_check_branch
          %1040 = sbr.rel (%p1038) target = $region60
        $region59: #{tpu_custom_call.1} parent=55 // pred_region
          %p1041 = scmp.lt.s32.totalorder %s21, 1
          %s1042 = scalar_select %p1041, %s21, 1
          %s1043 = smul.addr %s1042, 8
          %s1044 = smul.addr %s1043, 8
          %s1045 = scalar_lea.vmem %s3, %s1044
        $region60: #{tpu_custom_call.1} parent=55 // pred_fallthru
          _
      $region56: #{tpu_custom_call.1} parent=5 // pred_fallthru
        _
    $region6: #{tpu_custom_call.1} parent=1 // loop_footer
      %s19 = sadd.s32 1, %s15
    $region7: #{tpu_custom_call.1} parent=1 // loop_footer_branch
      %14 = sbr.rel target = $region3
    $region8: #{tpu_custom_call.1} parent=1 // loop_exit
      _
    %1046 = vsyncpa [#allocation4], 1
    %s1047 = scalar_lea.sflag [#allocation4], 1
    %1048 = vsyncpa %s1047, 1
    %1049 = vsyncpa [#allocation5], 1
    %s1050 = scalar_lea.sflag [#allocation5], 1
    %1051 = vsyncpa %s1050, 1

</llo_original>
